<compile_context>
chip_gen: v7x
topology: tpu7x:2x2x1
jax: 0.10.0
libtpu: 0.0.40
codegen_flags: <defaults>
</compile_context>

<pallas_src>
import functools

import jax
import jax.numpy as jnp
from jax import lax
from jax.experimental import pallas as pl
from jax.experimental.pallas import tpu as pltpu

_LOG2E = 1.4426950408889634


def _flash_sdpa_kernel(q_ref, k_ref, v_ref, o_ref, qs_sc, m_sc, l_sc, acc_sc,
                       *, scale, mxu_dtype):
    """One (batch, q-tile, kv-tile) grid step of online-softmax attention."""
    kv_idx = pl.program_id(2)

    # ---- init at the first kv step of each (b, q-tile) ----------------------
    @pl.when(kv_idx == 0)
    def _():
        # Q tile is resident across the kv axis: fold the softmax scale and
        # log2(e) (exp2 trick) into it exactly once per q-tile.
        # Python truthiness matches PyTorch `if scale:` (None / 0.0 skip it).
        prescale = (_LOG2E * scale) if scale else _LOG2E
        qs_sc[...] = (q_ref[0].astype(jnp.float32) * prescale).astype(qs_sc.dtype)
        m_sc[...] = jnp.full_like(m_sc, -jnp.inf)
        l_sc[...] = jnp.zeros_like(l_sc)
        acc_sc[...] = jnp.zeros_like(acc_sc)

    q = qs_sc[...]                                 # (tq, D), pre-scaled
    k = k_ref[0]                                   # (tk, D)
    v = v_ref[0]                                   # (tk, Dv_pad)

    if mxu_dtype is not None:
        # bf16 MXU inputs (native path on v5e/v6e/v7x), f32 accumulation below.
        if q.dtype != mxu_dtype:
            q = q.astype(mxu_dtype)
        k = k.astype(mxu_dtype)
        v = v.astype(mxu_dtype)

    # scores (already base-2 scaled): contraction over the last dim of both
    # operands -> no materialized K^T.
    s = lax.dot_general(q, k,
                        dimension_numbers=(((1,), (1,)), ((), ())),
                        preferred_element_type=jnp.float32)        # (tq, tk)

    # ---- online (streaming) softmax update in base-2 -------------------------
    m_prev = m_sc[...]                                             # (tq, 1)
    m_new = jnp.maximum(m_prev, jnp.max(s, axis=-1, keepdims=True))
    alpha = jnp.exp2(m_prev - m_new)                               # rescale old
    p = jnp.exp2(s - m_new)                                        # (tq, tk)
    l_sc[...] = alpha * l_sc[...] + jnp.sum(p, axis=-1, keepdims=True)
    # Explicit cast of P to the MXU dtype (v already carries mxu_dtype when set)
    acc_sc[...] = alpha * acc_sc[...] + jnp.dot(
        p.astype(v.dtype), v, preferred_element_type=jnp.float32)  # (tq, Dv_pad)
    m_sc[...] = m_new

    # ---- finalize on the last kv step ----------------------------------------
    @pl.when(kv_idx == pl.num_programs(2) - 1)
    def _():
        # one reciprocal per q-tile; exact keeps f32-level accuracy on the
        # mxu_dtype=None path (approx=True is a free swap at bf16 tolerances).
        inv_l = pl.reciprocal(l_sc[...], approx=False)
        o_ref[0] = (acc_sc[...] * inv_l).astype(o_ref.dtype)


def _pick_tile(length, target):
    """Largest MXU-friendly tile <= target that evenly divides `length`.

    Prefers multiples of 256, then 128 (full MXU fill on v6e/v7x / v5e), then
    falls back to multiples of 8 (layout minimum).
    """
    if length <= target:
        return length
    for step in (256, 128, 8):
        t = (target // step) * step
        while t >= step:
            if length % t == 0:
                return t
            t -= step
    return length


def _round_up(x, m):
    return ((x + m - 1) // m) * m


def _vmem_estimate(tq, tk, D, Dv_pad, q_isz, kv_isz, out_isz, qs_isz, kv_buffers):
    b = 0
    b += 2 * tq * D * q_isz                      # Q tiles (double buffered)
    b += kv_buffers * tk * D * kv_isz            # K tiles
    b += kv_buffers * tk * Dv_pad * kv_isz       # V tiles
    b += 2 * tq * Dv_pad * out_isz               # output tiles
    b += tq * D * qs_isz + 2 * tq * 4 + tq * Dv_pad * 4   # scratch (qs, m, l, acc)
    b += 3 * tq * tk * 4                         # live f32 score/prob temporaries
    return b


def scaled_dot_product_attention(Q, K, V, scale=None, *,
                                 block_q=512, block_k=512,
                                 mxu_dtype=jnp.bfloat16,
                                 kv_buffers=2):
    """Pallas TPU implementation of Scaled_Dot_Product_Attention.forward.

    Q: [B, Lq, D], K: [B, Lk, D], V: [B, Lk, Dv] -> context [B, Lq, Dv]

    mxu_dtype=jnp.bfloat16 (default) runs both matmuls on the native bf16 MXU
    with f32 accumulation (~1e-2 level accuracy); mxu_dtype=None keeps exact
    f32 operands.  kv_buffers=3 enables deeper K/V pipelining (useful on v5e)
    when the installed Pallas supports pl.Buffered.
    """
    B, Lq, D = Q.shape
    Bk, Lk, Dk = K.shape
    Bv, Lv, Dv = V.shape
    assert B == Bk == Bv and D == Dk and Lk == Lv

    # Lane-dense output / accumulator: pad Dv up to a multiple of 128 so the PV
    # matmul fills the MXU N dim and the final stores are unmasked.
    Dv_pad = Dv if Dv % 128 == 0 else _round_up(Dv, 128)
    V_k = V if Dv_pad == Dv else jnp.pad(V, ((0, 0), (0, 0), (0, Dv_pad - Dv)))

    tq = _pick_tile(Lq, block_q)
    tk = _pick_tile(Lk, block_k)

    # Keep >= 2 independent (batch, q-tile) units so both v7x TensorCores are fed.
    if B * (Lq // tq) < 2:
        for cand in (tq // 2, tq // 4):
            if cand >= 8 and cand % 8 == 0 and Lq % cand == 0:
                tq = cand
                break

    grid = (B, Lq // tq, Lk // tk)

    # Pre-scaled Q scratch lives in the MXU dtype only when its layout is
    # cleanly bf16-tileable; otherwise keep it f32 and cast at the dot.
    if mxu_dtype is not None and tq % 16 == 0 and D % 128 == 0:
        qs_dtype = mxu_dtype
    else:
        qs_dtype = jnp.float32

    kernel = functools.partial(_flash_sdpa_kernel, scale=scale,
                               mxu_dtype=mxu_dtype)

    q_isz = jnp.dtype(Q.dtype).itemsize
    k_isz = jnp.dtype(K.dtype).itemsize
    v_isz = jnp.dtype(V_k.dtype).itemsize
    cost = pl.CostEstimate(
        flops=2 * B * Lq * Lk * (D + Dv_pad),
        transcendentals=B * Lq * Lk,
        bytes_accessed=int(Q.size * q_isz + K.size * k_isz + V_k.size * v_isz
                           + B * Lq * Dv_pad * q_isz),
    )

    # Optional >2-deep K/V buffering (v5e DMA hiding); only if supported.
    kv_pipe = {}
    if kv_buffers is not None and kv_buffers != 2 and hasattr(pl, "Buffered"):
        try:
            pl.BlockSpec((8, 128), lambda i: (i, 0),
                         pipeline_mode=pl.Buffered(kv_buffers))
            kv_pipe = {"pipeline_mode": pl.Buffered(kv_buffers)}
        except TypeError:
            kv_pipe = {}
    n_kv_buf = kv_buffers if kv_pipe else 2

    compiler_kwargs = dict(
        dimension_semantics=("parallel", "parallel", "arbitrary"))
    vmem_est = _vmem_estimate(tq, tk, D, Dv_pad, q_isz, max(k_isz, v_isz),
                              q_isz, jnp.dtype(qs_dtype).itemsize, n_kv_buf)
    if vmem_est > (16 << 20):
        # Budget derived against v7x's 64 MiB physical VMEM as the tightest chip.
        compiler_kwargs["vmem_limit_bytes"] = int(min(vmem_est * 3 // 2, 56 << 20))

    out = pl.pallas_call(
        kernel,
        out_shape=jax.ShapeDtypeStruct((B, Lq, Dv_pad), Q.dtype),
        grid_spec=pltpu.PrefetchScalarGridSpec(
            num_scalar_prefetch=0,
            grid=grid,
            in_specs=[
                pl.BlockSpec((1, tq, D), lambda b, qi, ki: (b, qi, 0)),
                pl.BlockSpec((1, tk, D), lambda b, qi, ki: (b, ki, 0), **kv_pipe),
                pl.BlockSpec((1, tk, Dv_pad), lambda b, qi, ki: (b, ki, 0),
                             **kv_pipe),
            ],
            out_specs=pl.BlockSpec((1, tq, Dv_pad), lambda b, qi, ki: (b, qi, 0)),
            scratch_shapes=[
                pltpu.VMEM((tq, D), qs_dtype),       # pre-scaled Q (log2e folded)
                pltpu.VMEM((tq, 1), jnp.float32),    # running max m (base-2)
                pltpu.VMEM((tq, 1), jnp.float32),    # running denom l
                pltpu.VMEM((tq, Dv_pad), jnp.float32),  # running context acc
            ],
        ),
        compiler_params=pltpu.CompilerParams(**compiler_kwargs),
        cost_estimate=cost,
    )(Q, K, V_k)

    if Dv_pad != Dv:
        out = out[..., :Dv]
    return out


def _reference(Q, K, V, scale=None):
    scores = jnp.einsum("bqd,bkd->bqk", Q, K)
    if scale:
        scores = scores * scale
    attn = jax.nn.softmax(scores, axis=-1)
    return jnp.einsum("bqk,bkd->bqd", attn, V)


if __name__ == "__main__":
    key = jax.random.PRNGKey(0)
    kq, kk, kv = jax.random.split(key, 3)

    # Small shapes consistent with the module.
    B, Lq, Lk, D = 2, 8, 8, 32
    Q = jax.random.normal(kq, (B, Lq, D), dtype=jnp.float32)
    K = jax.random.normal(kk, (B, Lk, D), dtype=jnp.float32)
    V = jax.random.normal(kv, (B, Lk, D), dtype=jnp.float32)

    scale = 1.0 / (D ** 0.5)   # "论文为根号dim_K"

    # Default path: bf16 MXU operands, f32 accumulation (bf16-level tolerance).
    out = jax.block_until_ready(scaled_dot_product_attention(Q, K, V, scale=scale))
    ref = _reference(Q, K, V, scale)
    assert out.shape == (B, Lq, D)
    assert jnp.allclose(out, ref, atol=5e-2, rtol=5e-2)

    # Exact f32 path.
    out_f32 = jax.block_until_ready(
        scaled_dot_product_attention(Q, K, V, scale=scale, mxu_dtype=None))
    assert jnp.allclose(out_f32, ref, atol=1e-4, rtol=1e-4)

    # scale=None path (PyTorch `if scale:` falsy branch).
    out_ns = jax.block_until_ready(
        scaled_dot_product_attention(Q, K, V, scale=None, mxu_dtype=None))
    assert jnp.allclose(out_ns, _reference(Q, K, V, None), atol=1e-4, rtol=1e-4)

    # Multi-tile online-softmax path (2 q-tiles x 2 kv-tiles), bf16 MXU default.
    B2, L2, D2 = 2, 128, 32
    kq2, kk2, kv2 = jax.random.split(jax.random.PRNGKey(1), 3)
    Q2 = jax.random.normal(kq2, (B2, L2, D2), dtype=jnp.float32)
    K2 = jax.random.normal(kk2, (B2, L2, D2), dtype=jnp.float32)
    V2 = jax.random.normal(kv2, (B2, L2, D2), dtype=jnp.float32)
    s2 = 1.0 / (D2 ** 0.5)
    out2 = jax.block_until_ready(
        scaled_dot_product_attention(Q2, K2, V2, scale=s2, block_q=64, block_k=64))
    assert jnp.allclose(out2, _reference(Q2, K2, V2, s2), atol=5e-2, rtol=5e-2)

    print("KERNEL_OK")
</pallas_src>

<mosaic_0001>
module attributes {stable_mosaic.version = 11 : i64} {
  func.func @_flash_sdpa_kernel(%arg0: i32, %arg1: i32, %arg2: i32, %arg3: memref<1x8x32xf32, #tpu.memory_space<vmem>>, %arg4: memref<1x8x32xf32, #tpu.memory_space<vmem>>, %arg5: memref<1x8x128xf32, #tpu.memory_space<vmem>>, %arg6: memref<1x8x128xf32, #tpu.memory_space<vmem>>, %arg7: memref<8x32xf32, #tpu.memory_space<vmem>>, %arg8: memref<8x1xf32, #tpu.memory_space<vmem>>, %arg9: memref<8x1xf32, #tpu.memory_space<vmem>>, %arg10: memref<8x128xf32, #tpu.memory_space<vmem>>) attributes {dimension_semantics = [#tpu.dimension_semantics<parallel>, #tpu.dimension_semantics<parallel>, #tpu.dimension_semantics<arbitrary>], iteration_bounds = array<i64: 2, 1, 1>, scalar_prefetch = 0 : i64, scratch_operands = 4 : i64, tpu.core_type = #tpu.core_type<tc>, window_params = [{transform_indices = @transform_0, window_bounds = array<i64: 1, 8, 32>}, {transform_indices = @transform_1, window_bounds = array<i64: 1, 8, 32>}, {transform_indices = @transform_2, window_bounds = array<i64: 1, 8, 128>}, {transform_indices = @transform_3, window_bounds = array<i64: 1, 8, 128>}]} {
    %c0_i32 = arith.constant 0 : i32
    %0 = arith.cmpi eq, %arg2, %c0_i32 : i32
    %1 = arith.extui %0 : i1 to i32
    %c0_i32_0 = arith.constant 0 : i32
    %2 = arith.cmpi ne, %1, %c0_i32_0 : i32
    scf.if %2 {
      %c0_25 = arith.constant 0 : index
      %c0_26 = arith.constant 0 : index
      %c0_27 = arith.constant 0 : index
      %38 = vector.load %arg3[%c0_25, %c0_26, %c0_27] : memref<1x8x32xf32, #tpu.memory_space<vmem>>, vector<1x8x32xf32>
      %39 = vector.shape_cast %38 : vector<1x8x32xf32> to vector<8x32xf32>
      %cst_28 = arith.constant 0.255034864 : f32
      %40 = vector.broadcast %cst_28 : f32 to vector<8x32xf32>
      %41 = arith.mulf %39, %40 : vector<8x32xf32>
      %c0_29 = arith.constant 0 : index
      %c0_30 = arith.constant 0 : index
      %42 = vector.load %arg7[%c0_29, %c0_30] : memref<8x32xf32, #tpu.memory_space<vmem>>, vector<8x32xf32>
      tpu.vector_store %arg7[%c0_29, %c0_30], %41 {strides = array<i32>} : memref<8x32xf32, #tpu.memory_space<vmem>>, vector<8x32xf32>,
      %cst_31 = arith.constant 0xFF800000 : f32
      %43 = vector.broadcast %cst_31 : f32 to vector<8x1xf32>
      %c0_32 = arith.constant 0 : index
      %c0_33 = arith.constant 0 : index
      %44 = vector.load %arg8[%c0_32, %c0_33] : memref<8x1xf32, #tpu.memory_space<vmem>>, vector<8x1xf32>
      tpu.vector_store %arg8[%c0_32, %c0_33], %43 {strides = array<i32>} : memref<8x1xf32, #tpu.memory_space<vmem>>, vector<8x1xf32>,
      %cst_34 = arith.constant 0.000000e+00 : f32
      %45 = vector.broadcast %cst_34 : f32 to vector<8x1xf32>
      %c0_35 = arith.constant 0 : index
      %c0_36 = arith.constant 0 : index
      %46 = vector.load %arg9[%c0_35, %c0_36] : memref<8x1xf32, #tpu.memory_space<vmem>>, vector<8x1xf32>
      tpu.vector_store %arg9[%c0_35, %c0_36], %45 {strides = array<i32>} : memref<8x1xf32, #tpu.memory_space<vmem>>, vector<8x1xf32>,
      %cst_37 = arith.constant 0.000000e+00 : f32
      %47 = vector.broadcast %cst_37 : f32 to vector<8x128xf32>
      %c0_38 = arith.constant 0 : index
      %c0_39 = arith.constant 0 : index
      %48 = vector.load %arg10[%c0_38, %c0_39] : memref<8x128xf32, #tpu.memory_space<vmem>>, vector<8x128xf32>
      tpu.vector_store %arg10[%c0_38, %c0_39], %47 {strides = array<i32>} : memref<8x128xf32, #tpu.memory_space<vmem>>, vector<8x128xf32>,
    } else {
    }
    %c0 = arith.constant 0 : index
    %c0_1 = arith.constant 0 : index
    %3 = vector.load %arg7[%c0, %c0_1] : memref<8x32xf32, #tpu.memory_space<vmem>>, vector<8x32xf32>
    %c0_2 = arith.constant 0 : index
    %c0_3 = arith.constant 0 : index
    %c0_4 = arith.constant 0 : index
    %4 = vector.load %arg4[%c0_2, %c0_3, %c0_4] : memref<1x8x32xf32, #tpu.memory_space<vmem>>, vector<1x8x32xf32>
    %5 = vector.shape_cast %4 : vector<1x8x32xf32> to vector<8x32xf32>
    %c0_5 = arith.constant 0 : index
    %c0_6 = arith.constant 0 : index
    %c0_7 = arith.constant 0 : index
    %6 = vector.load %arg5[%c0_5, %c0_6, %c0_7] : memref<1x8x128xf32, #tpu.memory_space<vmem>>, vector<1x8x128xf32>
    %7 = vector.shape_cast %6 : vector<1x8x128xf32> to vector<8x128xf32>
    %8 = arith.truncf %3 : vector<8x32xf32> to vector<8x32xbf16>
    %9 = arith.truncf %5 : vector<8x32xf32> to vector<8x32xbf16>
    %10 = arith.truncf %7 : vector<8x128xf32> to vector<8x128xbf16>
    %cst = arith.constant dense<0.000000e+00> : vector<8x8xf32>
    %11 = tpu.matmul %8, %9, %cst {dimension_numbers = #tpu.dot_dimension_numbers<[1], [1], [0], [0], [0, 0, 1, 0], [], []>} : vector<8x32xbf16>, vector<8x32xbf16>, vector<8x8xf32> -> vector<8x8xf32>
    %c0_8 = arith.constant 0 : index
    %c0_9 = arith.constant 0 : index
    %12 = vector.load %arg8[%c0_8, %c0_9] : memref<8x1xf32, #tpu.memory_space<vmem>>, vector<8x1xf32>
    %cst_10 = arith.constant dense<0xFF800000> : vector<8xf32>
    %13 = vector.multi_reduction <maximumf>, %11, %cst_10 [1] : vector<8x8xf32> to vector<8xf32>
    %14 = vector.shape_cast %13 : vector<8xf32> to vector<8x1xf32>
    %15 = arith.maximumf %12, %14 : vector<8x1xf32>
    %16 = arith.subf %12, %15 : vector<8x1xf32>
    %17 = math.exp2 %16 : vector<8x1xf32>
    %18 = vector.broadcast %15 : vector<8x1xf32> to vector<8x8xf32>
    %19 = arith.subf %11, %18 : vector<8x8xf32>
    %20 = math.exp2 %19 : vector<8x8xf32>
    %c0_11 = arith.constant 0 : index
    %c0_12 = arith.constant 0 : index
    %21 = vector.load %arg9[%c0_11, %c0_12] : memref<8x1xf32, #tpu.memory_space<vmem>>, vector<8x1xf32>
    %22 = arith.mulf %17, %21 : vector<8x1xf32>
    %cst_13 = arith.constant dense<0.000000e+00> : vector<8xf32>
    %23 = vector.multi_reduction <add>, %20, %cst_13 [1] : vector<8x8xf32> to vector<8xf32>
    %24 = vector.shape_cast %23 : vector<8xf32> to vector<8x1xf32>
    %25 = arith.addf %22, %24 : vector<8x1xf32>
    %c0_14 = arith.constant 0 : index
    %c0_15 = arith.constant 0 : index
    %26 = vector.load %arg9[%c0_14, %c0_15] : memref<8x1xf32, #tpu.memory_space<vmem>>, vector<8x1xf32>
    tpu.vector_store %arg9[%c0_14, %c0_15], %25 {strides = array<i32>} : memref<8x1xf32, #tpu.memory_space<vmem>>, vector<8x1xf32>,
    %c0_16 = arith.constant 0 : index
    %c0_17 = arith.constant 0 : index
    %27 = vector.load %arg10[%c0_16, %c0_17] : memref<8x128xf32, #tpu.memory_space<vmem>>, vector<8x128xf32>
    %28 = vector.broadcast %17 : vector<8x1xf32> to vector<8x128xf32>
    %29 = arith.mulf %28, %27 : vector<8x128xf32>
    %30 = arith.truncf %20 : vector<8x8xf32> to vector<8x8xbf16>
    %cst_18 = arith.constant dense<0.000000e+00> : vector<8x128xf32>
    %31 = tpu.matmul %30, %10, %cst_18 {dimension_numbers = #tpu.dot_dimension_numbers<[1], [0], [0], [1], [0, 0, 1, 1], [], []>} : vector<8x8xbf16>, vector<8x128xbf16>, vector<8x128xf32> -> vector<8x128xf32>
    %32 = arith.addf %29, %31 : vector<8x128xf32>
    %c0_19 = arith.constant 0 : index
    %c0_20 = arith.constant 0 : index
    %33 = vector.load %arg10[%c0_19, %c0_20] : memref<8x128xf32, #tpu.memory_space<vmem>>, vector<8x128xf32>
    tpu.vector_store %arg10[%c0_19, %c0_20], %32 {strides = array<i32>} : memref<8x128xf32, #tpu.memory_space<vmem>>, vector<8x128xf32>,
    %c0_21 = arith.constant 0 : index
    %c0_22 = arith.constant 0 : index
    %34 = vector.load %arg8[%c0_21, %c0_22] : memref<8x1xf32, #tpu.memory_space<vmem>>, vector<8x1xf32>
    tpu.vector_store %arg8[%c0_21, %c0_22], %15 {strides = array<i32>} : memref<8x1xf32, #tpu.memory_space<vmem>>, vector<8x1xf32>,
    %c0_i32_23 = arith.constant 0 : i32
    %35 = arith.cmpi eq, %arg2, %c0_i32_23 : i32
    %36 = arith.extui %35 : i1 to i32
    %c0_i32_24 = arith.constant 0 : i32
    %37 = arith.cmpi ne, %36, %c0_i32_24 : i32
    scf.if %37 {
      %c0_25 = arith.constant 0 : index
      %c0_26 = arith.constant 0 : index
      %38 = vector.load %arg9[%c0_25, %c0_26] : memref<8x1xf32, #tpu.memory_space<vmem>>, vector<8x1xf32>
      %39 = tpu.reciprocal %38 : vector<8x1xf32> -> vector<8x1xf32>
      %c0_27 = arith.constant 0 : index
      %c0_28 = arith.constant 0 : index
      %40 = vector.load %arg10[%c0_27, %c0_28] : memref<8x128xf32, #tpu.memory_space<vmem>>, vector<8x128xf32>
      %41 = vector.broadcast %39 : vector<8x1xf32> to vector<8x128xf32>
      %42 = arith.mulf %40, %41 : vector<8x128xf32>
      %c0_29 = arith.constant 0 : index
      %c0_30 = arith.constant 0 : index
      %c0_31 = arith.constant 0 : index
      %43 = vector.load %arg6[%c0_29, %c0_30, %c0_31] : memref<1x8x128xf32, #tpu.memory_space<vmem>>, vector<1x8x128xf32>
      %44 = vector.shape_cast %43 : vector<1x8x128xf32> to vector<8x128xf32>
      %45 = vector.shape_cast %42 : vector<8x128xf32> to vector<1x8x128xf32>
      tpu.vector_store %arg6[%c0_29, %c0_30, %c0_31], %45 {strides = array<i32>} : memref<1x8x128xf32, #tpu.memory_space<vmem>>, vector<1x8x128xf32>,
    } else {
    }
    return
  }
  func.func @transform_0(%arg0: i32, %arg1: i32, %arg2: i32) -> (i32, i32, i32) {
    %c0_i32 = arith.constant 0 : i32
    %c0_i32_0 = arith.constant 0 : i32
    return %arg0, %arg1, %c0_i32 : i32, i32, i32
  }
  func.func @transform_1(%arg0: i32, %arg1: i32, %arg2: i32) -> (i32, i32, i32) {
    %c0_i32 = arith.constant 0 : i32
    %c0_i32_0 = arith.constant 0 : i32
    return %arg0, %arg2, %c0_i32 : i32, i32, i32
  }
  func.func @transform_2(%arg0: i32, %arg1: i32, %arg2: i32) -> (i32, i32, i32) {
    %c0_i32 = arith.constant 0 : i32
    %c0_i32_0 = arith.constant 0 : i32
    return %arg0, %arg2, %c0_i32 : i32, i32, i32
  }
  func.func @transform_3(%arg0: i32, %arg1: i32, %arg2: i32) -> (i32, i32, i32) {
    %c0_i32 = arith.constant 0 : i32
    %c0_i32_0 = arith.constant 0 : i32
    return %arg0, %arg1, %c0_i32 : i32, i32, i32
  }
}

</mosaic_0001>

<llo_original>
// kernel: tpu_custom_call.1
$region0: #{tpu_custom_call.1}
  #allocation0 [shape = 'u32[]', space=smem, size = 0x4, offset = 0x4, fixed_abs, tag = 'smem constant byte address 0x4 - core index']
  #allocation1 [shape = 'u32[144,128]{1,0:T(1,128)}', space=vmem, size = 0x12000, scoped, tag = 'internal scratch']
  #allocation2 [shape = 'f32[8,32]{1,0:T(8,128)}', space=vmem, size = 0x1000, scoped, tag = 'scratch operand']
  #allocation3 [shape = 'f32[8,1]{1,0:T(8,128)}', space=vmem, size = 0x1000, scoped, tag = 'scratch operand']
  #allocation4 [shape = 'f32[8,1]{1,0:T(8,128)}', space=vmem, size = 0x1000, scoped, tag = 'scratch operand']
  #allocation5 [shape = 'f32[8,128]{1,0:T(8,128)}', space=vmem, size = 0x1000, scoped, tag = 'scratch operand']
  %s0 = inlined_call_operand.hbm [shape: f32[2,8,32], index: 0, kind: input, shape index: {}]
  %s1 = inlined_call_operand.hbm [shape: f32[2,8,32], index: 1, kind: input, shape index: {}]
  %s2 = inlined_call_operand.hbm [shape: f32[2,8,128], index: 2, kind: input, shape index: {}]
  %s3 = inlined_call_operand.hbm [shape: f32[2,8,128], index: 3, kind: output, shape index: {}]
  %s4 = sld [smem:[#allocation0]]
  $region65: #{tpu_custom_call.1} parent=0
    _
  %s6 = ssub.s32 1, %s4
  %s7 = scalar_select 0, %s6, %s4
  $region1: #{tpu_custom_call.1} parent=0
    #allocation6 [shape = 'u8[8192]{0}', space=vmem, size = 0x2000, scoped, tag = 'input window, operand 0']
    #allocation7 [shape = 's32[2]{0}', space=sflag, size = 0x8, scoped, tag = 'scoped memory for tpu_custom_call.1']
    #allocation8 [shape = 's32[2]{0}', space=sflag, size = 0x8, scoped, tag = 'scoped memory for tpu_custom_call.1']
    #allocation9 [shape = 'u8[8192]{0}', space=vmem, size = 0x2000, scoped, tag = 'input window, operand 1']
    #allocation10 [shape = 's32[2]{0}', space=sflag, size = 0x8, scoped, tag = 'scoped memory for tpu_custom_call.1']
    #allocation11 [shape = 'u8[8192]{0}', space=vmem, size = 0x2000, scoped, tag = 'input window, operand 2']
    #allocation12 [shape = 'u8[8192]{0}', space=vmem, size = 0x2000, scoped, tag = 'output window, operand 0']
    %8 = vsyncpa [#allocation7], 0
    %s9 = scalar_lea.sflag [#allocation7], 1
    %10 = vsyncpa %s9, 0
    %11 = vsyncpa [#allocation10], 0
    %s12 = scalar_lea.sflag [#allocation10], 1
    %13 = vsyncpa %s12, 0
    %14 = vsyncpa [#allocation8], 0
    %s15 = scalar_lea.sflag [#allocation8], 1
    %16 = vsyncpa %s15, 0
    loop: start=0, step=1, limit=4
    $region2: #{tpu_custom_call.1} parent=1 // loop_pre_header
      _
    $region3: #{tpu_custom_call.1} parent=1 // loop_header
      %s18 = sphi 0, %s22
      %p19 = scmp.ge.s32.totalorder %s18, 4
      %s25 = sphi 0, %s44
      %s26 = sphi 0, %s40
      %s27 = sphi 0, %s36
      %s28 = sphi 0, %s25
      %s29 = sphi 0, %s26
      %s30 = sphi 0, %s27
      %s31 = sphi 0, %s28
      %s32 = sphi 0, %s29
      %s33 = sphi 0, %s30
      %s49 = sphi 0, %s51
      %s52 = sphi 0, %s49
      %s53 = sphi 0, %s52
      %s69 = sphi 0, %s53
      %s77 = sphi 0, %s79
      %s80 = sphi 0, %s77
      %s81 = sphi 0, %s80
      %s97 = sphi 0, %s81
      %s105 = sphi 0, %s107
      %s108 = sphi 0, %s105
      %s109 = sphi 0, %s108
      %s125 = sphi 0, %s109
      %s133 = sphi 0, %s135
      %s136 = sphi 0, %s133
      %s137 = sphi 0, %s136
      %s153 = sphi 0, %s137
    $region4: #{tpu_custom_call.1} parent=1 // loop_header_branch
      %21 = sbr.rel (%p19) target = $region8
    $region5: #{tpu_custom_call.1} parent=1 // loop_body
      %s23 = ssub.s32 %s18, 1
      %s24 = ssub.s32 %s18, 2
      %s34 = sadd.s32 1, %s27
      %p35 = scmp.ge.s32.totalorder %s34, 1
      %s36 = scalar_select %p35, 0, %s34
      %s37 = sadd.s32 1, %s26
      %s38 = scalar_select %p35, %s37, %s26
      %p39 = scmp.ge.s32.totalorder %s38, 1
      %s40 = scalar_select %p39, 0, %s38
      %s41 = sadd.s32 1, %s25
      %s42 = scalar_select %p39, %s41, %s25
      %p43 = scmp.ge.s32.totalorder %s42, 2
      %s44 = scalar_select %p43, 0, %s42
      %s45 = ssub.s32 %s25, %s44
      %s46 = ssub.s32 %s26, %s40
      %s47 = sor.u32 %s45, %s46
      %p48 = scmp.eq.s32.totalorder %s47, 0
      %s50 = sadd.s32 %s49, 1
      %s51 = scalar_select %p48, %s49, %s50
      %p54 = pneg %p48
      %p55 = scmp.eq.s32.totalorder %s18, 1
      %p56 = por %p54, %p55
      %p57 = scmp.ne.s32.totalorder %s49, %s52
      %p58 = scmp.eq.s32.totalorder %s18, 0
      %p59 = por %p57, %p58
      %p60 = scmp.ne.s32.totalorder %s49, %s52
      %p61 = scmp.eq.s32.totalorder %s23, 1
      %p62 = por %p60, %p61
      %p63 = scmp.ne.s32.totalorder %s52, %s53
      %p64 = scmp.eq.s32.totalorder %s23, 0
      %p65 = por %p63, %p64
      %p66 = scmp.ne.s32.totalorder %s52, %s53
      %p67 = scmp.eq.s32.totalorder %s24, 1
      %p68 = por %p66, %p67
      %p70 = scmp.ne.s32.totalorder %s53, %s69
      %p71 = scmp.eq.s32.totalorder %s24, 0
      %p72 = por %p70, %p71
      %s73 = ssub.s32 %s25, %s44
      %s74 = ssub.s32 %s27, %s36
      %s75 = sor.u32 %s73, %s74
      %p76 = scmp.eq.s32.totalorder %s75, 0
      %s78 = sadd.s32 %s77, 1
      %s79 = scalar_select %p76, %s77, %s78
      %p82 = pneg %p76
      %p83 = scmp.eq.s32.totalorder %s18, 1
      %p84 = por %p82, %p83
      %p85 = scmp.ne.s32.totalorder %s77, %s80
      %p86 = scmp.eq.s32.totalorder %s18, 0
      %p87 = por %p85, %p86
      %p88 = scmp.ne.s32.totalorder %s77, %s80
      %p89 = scmp.eq.s32.totalorder %s23, 1
      %p90 = por %p88, %p89
      %p91 = scmp.ne.s32.totalorder %s80, %s81
      %p92 = scmp.eq.s32.totalorder %s23, 0
      %p93 = por %p91, %p92
      %p94 = scmp.ne.s32.totalorder %s80, %s81
      %p95 = scmp.eq.s32.totalorder %s24, 1
      %p96 = por %p94, %p95
      %p98 = scmp.ne.s32.totalorder %s81, %s97
      %p99 = scmp.eq.s32.totalorder %s24, 0
      %p100 = por %p98, %p99
      %s101 = ssub.s32 %s25, %s44
      %s102 = ssub.s32 %s27, %s36
      %s103 = sor.u32 %s101, %s102
      %p104 = scmp.eq.s32.totalorder %s103, 0
      %s106 = sadd.s32 %s105, 1
      %s107 = scalar_select %p104, %s105, %s106
      %p110 = pneg %p104
      %p111 = scmp.eq.s32.totalorder %s18, 1
      %p112 = por %p110, %p111
      %p113 = scmp.ne.s32.totalorder %s105, %s108
      %p114 = scmp.eq.s32.totalorder %s18, 0
      %p115 = por %p113, %p114
      %p116 = scmp.ne.s32.totalorder %s105, %s108
      %p117 = scmp.eq.s32.totalorder %s23, 1
      %p118 = por %p116, %p117
      %p119 = scmp.ne.s32.totalorder %s108, %s109
      %p120 = scmp.eq.s32.totalorder %s23, 0
      %p121 = por %p119, %p120
      %p122 = scmp.ne.s32.totalorder %s108, %s109
      %p123 = scmp.eq.s32.totalorder %s24, 1
      %p124 = por %p122, %p123
      %p126 = scmp.ne.s32.totalorder %s109, %s125
      %p127 = scmp.eq.s32.totalorder %s24, 0
      %p128 = por %p126, %p127
      %s129 = ssub.s32 %s25, %s44
      %s130 = ssub.s32 %s26, %s40
      %s131 = sor.u32 %s129, %s130
      %p132 = scmp.eq.s32.totalorder %s131, 0
      %s134 = sadd.s32 %s133, 1
      %s135 = scalar_select %p132, %s133, %s134
      %p138 = pneg %p132
      %p139 = scmp.eq.s32.totalorder %s18, 1
      %p140 = por %p138, %p139
      %p141 = scmp.ne.s32.totalorder %s133, %s136
      %p142 = scmp.eq.s32.totalorder %s18, 0
      %p143 = por %p141, %p142
      %p144 = scmp.ne.s32.totalorder %s133, %s136
      %p145 = scmp.eq.s32.totalorder %s23, 1
      %p146 = por %p144, %p145
      %p147 = scmp.ne.s32.totalorder %s136, %s137
      %p148 = scmp.eq.s32.totalorder %s23, 0
      %p149 = por %p147, %p148
      %p150 = scmp.ne.s32.totalorder %s136, %s137
      %p151 = scmp.eq.s32.totalorder %s24, 1
      %p152 = por %p150, %p151
      %p154 = scmp.ne.s32.totalorder %s137, %s153
      %p155 = scmp.eq.s32.totalorder %s24, 0
      %p156 = por %p154, %p155
      %p157 = scmp.le.s32.totalorder 1, %s18
      %p158 = scmp.lt.s32.totalorder %s18, 3
      %p159 = pnand %p157, %p158
      %p160 = pneg %p159
      // Predicated region
      $region9: #{tpu_custom_call.1} parent=5 // pred_check
        _
      $region10: #{tpu_custom_call.1} parent=5 // pred_check_branch
        %162 = sbr.rel (%p159) target = $region12
      $region11: #{tpu_custom_call.1} parent=5 // pred_region
        %s163 = ssub.s32 %s18, 1
      $region12: #{tpu_custom_call.1} parent=5 // pred_fallthru
        _
      %p164 = scmp.lt.s32.totalorder %s18, 2
      // Predicated region
      $region13: #{tpu_custom_call.1} parent=5 // pred_check
        %p165 = pneg %p164
      $region14: #{tpu_custom_call.1} parent=5 // pred_check_branch
        %167 = sbr.rel (%p165) target = $region16
      $region15: #{tpu_custom_call.1} parent=5 // pred_region
        // Predicated region
        $region17: #{tpu_custom_call.1} parent=15 // pred_check
          %p168 = pneg %p59
        $region18: #{tpu_custom_call.1} parent=15 // pred_check_branch
          %170 = sbr.rel (%p168) target = $region20
        $region19: #{tpu_custom_call.1} parent=15 // pred_region
          %s171 = sand.u32 %s49, 1
          %s172 = scalar_lea.sflag [#allocation7], %s171
          %s173 = sand.u32 %s49, 1
          %s174 = smul.addr %s173, 8
          %s175 = scalar_lea.vmem [#allocation6], %s174
          %s177 = ssub.s32 128, 128
          %178 = vsyncadd %s172, %s177
          %s179 = sadd.s32 %s26, %s25
          %s180 = smul.addr %s179, 128
          %s181 = scalar_lea.hbm %s0, %s180
          %s183 = sshll.u32 %s175, 4
          %s184 = int_to_ptr.vmem [resolvable:$true] %s183
          %186 = dma.hbm_to_vmem [thread:$0]  %s181, 128, %s184, %s172
        $region20: #{tpu_custom_call.1} parent=15 // pred_fallthru
          _
        // Predicated region
        $region21: #{tpu_custom_call.1} parent=15 // pred_check
          %p187 = pneg %p87
        $region22: #{tpu_custom_call.1} parent=15 // pred_check_branch
          %189 = sbr.rel (%p187) target = $region24
        $region23: #{tpu_custom_call.1} parent=15 // pred_region
          %s190 = sand.u32 %s18, 1
          %s191 = scalar_lea.sflag [#allocation10], %s190
          %s192 = sand.u32 %s77, 1
          %s193 = smul.addr %s192, 8
          %s194 = scalar_lea.vmem [#allocation9], %s193
          %s196 = ssub.s32 128, 128
          %197 = vsyncadd %s191, %s196
          %s198 = sadd.s32 %s27, %s25
          %s199 = smul.addr %s198, 128
          %s200 = scalar_lea.hbm %s1, %s199
          %s202 = sshll.u32 %s194, 4
          %s203 = int_to_ptr.vmem [resolvable:$true] %s202
          %205 = dma.hbm_to_vmem [thread:$0]  %s200, 128, %s203, %s191
        $region24: #{tpu_custom_call.1} parent=15 // pred_fallthru
          _
        // Predicated region
        $region25: #{tpu_custom_call.1} parent=15 // pred_check
          %p206 = pneg %p115
        $region26: #{tpu_custom_call.1} parent=15 // pred_check_branch
          %208 = sbr.rel (%p206) target = $region28
        $region27: #{tpu_custom_call.1} parent=15 // pred_region
          %s209 = sand.u32 %s18, 1
          %s210 = scalar_lea.sflag [#allocation10], %s209
          %s211 = sand.u32 %s105, 1
          %s212 = smul.addr %s211, 8
          %s213 = scalar_lea.vmem [#allocation11], %s212
          %s215 = ssub.s32 128, 128
          %216 = vsyncadd %s210, %s215
          %s217 = sadd.s32 %s27, %s25
          %s218 = smul.addr %s217, 128
          %s219 = scalar_lea.hbm %s2, %s218
          %s221 = sshll.u32 %s213, 4
          %s222 = int_to_ptr.vmem [resolvable:$true] %s221
          %224 = dma.hbm_to_vmem [thread:$0]  %s219, 128, %s222, %s210
        $region28: #{tpu_custom_call.1} parent=15 // pred_fallthru
          _
      $region16: #{tpu_custom_call.1} parent=5 // pred_fallthru
        _
      %p225 = scmp.le.s32.totalorder 1, %s18
      %p226 = scmp.lt.s32.totalorder %s18, 3
      %p227 = pnand %p225, %p226
      %p228 = pneg %p227
      // Predicated region
      $region29: #{tpu_custom_call.1} parent=5 // pred_check
        _
      $region30: #{tpu_custom_call.1} parent=5 // pred_check_branch
        %230 = sbr.rel (%p227) target = $region32
      $region31: #{tpu_custom_call.1} parent=5 // pred_region
        %s231 = ssub.s32 %s18, 1
        %s232 = sand.u32 %s52, 1
        %s233 = scalar_lea.sflag [#allocation7], %s232
        %s234 = sand.u32 %s52, 1
        %s235 = smul.addr %s234, 8
        %s236 = scalar_lea.vmem [#allocation6], %s235
        // Predicated region
        $region33: #{tpu_custom_call.1} parent=31 // pred_check
          %p237 = pneg %p65
        $region34: #{tpu_custom_call.1} parent=31 // pred_check_branch
          %239 = sbr.rel (%p237) target = $region36
        $region35: #{tpu_custom_call.1} parent=31 // pred_region
          %240 = dma.done %s233, 128
        $region36: #{tpu_custom_call.1} parent=31 // pred_fallthru
          _
        %s241 = sand.u32 %s23, 1
        %s242 = scalar_lea.sflag [#allocation10], %s241
        %s243 = sand.u32 %s80, 1
        %s244 = smul.addr %s243, 8
        %s245 = scalar_lea.vmem [#allocation9], %s244
        // Predicated region
        $region37: #{tpu_custom_call.1} parent=31 // pred_check
          %p246 = pneg %p93
        $region38: #{tpu_custom_call.1} parent=31 // pred_check_branch
          %248 = sbr.rel (%p246) target = $region40
        $region39: #{tpu_custom_call.1} parent=31 // pred_region
          %249 = dma.done %s242, 128
        $region40: #{tpu_custom_call.1} parent=31 // pred_fallthru
          _
        %s250 = sand.u32 %s23, 1
        %s251 = scalar_lea.sflag [#allocation10], %s250
        %s252 = sand.u32 %s108, 1
        %s253 = smul.addr %s252, 8
        %s254 = scalar_lea.vmem [#allocation11], %s253
        // Predicated region
        $region41: #{tpu_custom_call.1} parent=31 // pred_check
          %p255 = pneg %p121
        $region42: #{tpu_custom_call.1} parent=31 // pred_check_branch
          %257 = sbr.rel (%p255) target = $region44
        $region43: #{tpu_custom_call.1} parent=31 // pred_region
          %258 = dma.done %s251, 128
        $region44: #{tpu_custom_call.1} parent=31 // pred_fallthru
          _
        %s259 = sand.u32 %s52, 1
        %s260 = scalar_lea.sflag [#allocation7], %s259
        %s261 = sand.u32 %s52, 1
        %s262 = smul.addr %s261, 8
        %s263 = scalar_lea.vmem [#allocation6], %s262
        %p264 = pneg %p65
        %p265 = pneg %p62
        %s266 = sand.u32 %s23, 1
        %s267 = scalar_lea.sflag [#allocation10], %s266
        %s268 = sand.u32 %s80, 1
        %s269 = smul.addr %s268, 8
        %s270 = scalar_lea.vmem [#allocation9], %s269
        %p271 = pneg %p93
        %p272 = pneg %p90
        %s273 = sand.u32 %s23, 1
        %s274 = scalar_lea.sflag [#allocation10], %s273
        %s275 = sand.u32 %s108, 1
        %s276 = smul.addr %s275, 8
        %s277 = scalar_lea.vmem [#allocation11], %s276
        %p278 = pneg %p121
        %p279 = pneg %p118
        %p280 = pneg %p149
        %p281 = pneg %p146
        %s282 = sand.u32 %s136, 1
        %s283 = scalar_lea.sflag [#allocation8], %s282
        %s284 = sand.u32 %s136, 1
        %s285 = smul.addr %s284, 8
        %s286 = scalar_lea.vmem [#allocation12], %s285
        %p288 = scmp.eq.s32.totalorder %s30, 0
        // Predicated region
        $region45: #{tpu_custom_call.1} parent=31 // pred_check
          %p289 = pneg %p288
        $region46: #{tpu_custom_call.1} parent=31 // pred_check_branch
          %291 = sbr.rel (%p289) target = $region48
        $region47: #{tpu_custom_call.1} parent=31 // pred_region
          %v292 = vld [vmem:[%s236] sm:$0xff]
          %v293 = vmul.f32 %v292, 0.25503486
          %vm294 = vcmask 261120
          %295 = vst.msk [vmem:[#allocation2] sm:$0xff] %vm294, %v293
          %vm296 = vcmask 7168
          %297 = vst.msk [vmem:[#allocation3] sm:$0xff] %vm296, -inf
          %298 = vst.msk [vmem:[#allocation4] sm:$0xff] %vm296, 0.0
          %299 = vst [vmem:[#allocation5] sm:$0xff] 0.0
        $region48: #{tpu_custom_call.1} parent=31 // pred_fallthru
          _
        %v300 = vld [vmem:[#allocation2] sm:$0xff]
        %v301 = vld [vmem:[%s245] sm:$0xff]
        %v302 = vld [vmem:[%s254] sm:$0xff]
        %v303 = vpack.c.bf16 %v300, %v300
        %v304 = vpack.c.bf16 %v301, %v301
        %v305 = vpack.c.bf16 %v302, %v302
        %vm306 = vcmask 261120
        %v308 = vsel %vm306, %v303, 0
        %v311 = vsel %vm306, %v304, 0
        %313 = vmatprep.subr.bf16.mxu0 0
        %314 = vmatpush1.bf16.xpose.msra.mxu0 %v311
        %315 = vmatprep.subr.bf16.mxu0 0
        %316 = vmatpush1.bf16.xpose.msra.mxu0 0
        %317 = vmatprep.subr.bf16.mxu0 0
        %318 = vmatpush1.bf16.xpose.msra.mxu0 0
        %319 = vmatprep.subr.bf16.mxu0 0
        %320 = vmatpush1.bf16.xpose.msra.mxu0 0
        %321 = vmatprep.subr.bf16.mxu0 0
        %322 = vmatpush1.bf16.xpose.msra.mxu0 0
        %323 = vmatprep.subr.bf16.mxu0 0
        %324 = vmatpush1.bf16.xpose.msra.mxu0 0
        %325 = vmatprep.subr.bf16.mxu0 0
        %326 = vmatpush1.bf16.xpose.msra.mxu0 0
        %327 = vmatprep.subr.bf16.mxu0 0
        %328 = vmatpush1.bf16.xpose.msra.mxu0 0
        %329 = vmatprep.subr.bf16.mxu0 0
        %330 = vmatpush1.bf16.xpose.msra.mxu0 0
        %331 = vmatprep.subr.bf16.mxu0 0
        %332 = vmatpush1.bf16.xpose.msra.mxu0 0
        %333 = vmatprep.subr.bf16.mxu0 0
        %334 = vmatpush1.bf16.xpose.msra.mxu0 0
        %335 = vmatprep.subr.bf16.mxu0 0
        %336 = vmatpush1.bf16.xpose.msra.mxu0 0
        %337 = vmatprep.subr.bf16.mxu0 0
        %338 = vmatpush1.bf16.xpose.msra.mxu0 0
        %339 = vmatprep.subr.bf16.mxu0 0
        %340 = vmatpush1.bf16.xpose.msra.mxu0 0
        %341 = vmatprep.subr.bf16.mxu0 0
        %342 = vmatpush1.bf16.xpose.msra.mxu0 0
        %343 = vmatprep.subr.bf16.mxu0 0
        %344 = vmatpush1.bf16.xpose.msra.mxu0 0
        %345 = vmatprep.mubr.bf16.mxu0 0
        %346 = vmatmul.mubr.bf16.gmra.mrb[0].mxu0 %v308
        %v347 = vpop.f32.mrb[0].mxu0
        %v348 = vadd.f32 0.0, %v347
        %v349 = vpop.f32.mrb[0].mxu0
        %v350 = vpop.f32.mrb[0].mxu0
        %v351 = vpop.f32.mrb[0].mxu0
        %352 = vdwg.mxu0
        %v353 = vld [vmem:[#allocation3] sm:$0xff]
        %vm354 = vcmask 64512
        %v355 = vsel %vm354, %v348, -inf
        %356 = vmax.xlane.f32.xlu0 %v355
        %v357 = vpop.xlane.xlu0 %356
        %v358 = vmax.f32 %v353, %v357
        %v359 = vsub.f32 %v353, %v358
        %v360 = vpow.pop %v359
        %362 = vset.pattern.permute.xlu0 0
        %363 = vperm.xlu0 %362, %v358
        %v364 = vpop.permute.xlu0 %363
        %v366 = vsub.f32 %v348, %v364
        %v367 = vpow.pop %v366
        %v368 = vld [vmem:[#allocation4] sm:$0xff]
        %v369 = vmul.f32 %v360, %v368
        %v370 = vsel %vm354, %v367, 0.0
        %371 = vadd.xlane.f32.xlu0 %v370
        %v372 = vpop.xlane.xlu0 %371
        %v373 = vadd.f32 %v369, %v372
        %vm374 = vcmask 7168
        %375 = vst.msk [vmem:[#allocation4] sm:$0xff] %vm374, %v373
        %v376 = vld [vmem:[#allocation5] sm:$0xff]
        %378 = vset.pattern.permute.xlu0 0
        %379 = vperm.xlu0 %378, %v360
        %v380 = vpop.permute.xlu0 %379
        %v382 = vmul.f32 %v380, %v376
        %v383 = vpack.c.bf16 %v367, %v367
        %v385 = vsel %vm354, %v383, 0
        %vm387 = vcmask 1043456
        %v389 = vsel %vm387, %v305, 0
        %391 = vmatprep.subr.bf16.mxu0 0
        %392 = vmatpush1.bf16.msra.mxu0 %v389
        %393 = vmatprep.subr.bf16.mxu0 0
        %394 = vmatpush1.bf16.msra.mxu0 0
        %395 = vmatprep.subr.bf16.mxu0 0
        %396 = vmatpush1.bf16.msra.mxu0 0
        %397 = vmatprep.subr.bf16.mxu0 0
        %398 = vmatpush1.bf16.msra.mxu0 0
        %399 = vmatprep.subr.bf16.mxu0 0
        %400 = vmatpush1.bf16.msra.mxu0 0
        %401 = vmatprep.subr.bf16.mxu0 0
        %402 = vmatpush1.bf16.msra.mxu0 0
        %403 = vmatprep.subr.bf16.mxu0 0
        %404 = vmatpush1.bf16.msra.mxu0 0
        %405 = vmatprep.subr.bf16.mxu0 0
        %406 = vmatpush1.bf16.msra.mxu0 0
        %407 = vmatprep.subr.bf16.mxu0 0
        %408 = vmatpush1.bf16.msra.mxu0 0
        %409 = vmatprep.subr.bf16.mxu0 0
        %410 = vmatpush1.bf16.msra.mxu0 0
        %411 = vmatprep.subr.bf16.mxu0 0
        %412 = vmatpush1.bf16.msra.mxu0 0
        %413 = vmatprep.subr.bf16.mxu0 0
        %414 = vmatpush1.bf16.msra.mxu0 0
        %415 = vmatprep.subr.bf16.mxu0 0
        %416 = vmatpush1.bf16.msra.mxu0 0
        %417 = vmatprep.subr.bf16.mxu0 0
        %418 = vmatpush1.bf16.msra.mxu0 0
        %419 = vmatprep.subr.bf16.mxu0 0
        %420 = vmatpush1.bf16.msra.mxu0 0
        %421 = vmatprep.subr.bf16.mxu0 0
        %422 = vmatpush1.bf16.msra.mxu0 0
        %423 = vmatprep.mubr.bf16.mxu0 0
        %424 = vmatmul.mubr.bf16.gmra.mrb[0].mxu0 %v385
        %v425 = vpop.f32.mrb[0].mxu0
        %v426 = vadd.f32 0.0, %v425
        %v427 = vpop.f32.mrb[0].mxu0
        %v428 = vpop.f32.mrb[0].mxu0
        %v429 = vpop.f32.mrb[0].mxu0
        %430 = vdwg.mxu0
        %v431 = vadd.f32 %v382, %v426
        %432 = vst [vmem:[#allocation5] sm:$0xff] %v431
        %433 = vst.msk [vmem:[#allocation3] sm:$0xff] %vm374, %v358
        // Predicated region
        $region49: #{tpu_custom_call.1} parent=31 // pred_check
          %p434 = pneg %p288
        $region50: #{tpu_custom_call.1} parent=31 // pred_check_branch
          %436 = sbr.rel (%p434) target = $region52
        $region51: #{tpu_custom_call.1} parent=31 // pred_region
          %v437 = vld [vmem:[#allocation4] sm:$0xff]
          %v438 = vrcp.pop %v437
          %v439 = vld [vmem:[#allocation5] sm:$0xff]
          %441 = vset.pattern.permute.xlu0 0
          %442 = vperm.xlu0 %441, %v438
          %v443 = vpop.permute.xlu0 %442
          %v445 = vmul.f32 %v439, %v443
          %446 = vst [vmem:[%s286] sm:$0xff] %v445
        $region52: #{tpu_custom_call.1} parent=31 // pred_fallthru
          _
        %s447 = sand.u32 %s136, 1
        %s448 = scalar_lea.sflag [#allocation8], %s447
        %s449 = sand.u32 %s136, 1
        %s450 = smul.addr %s449, 8
        %s451 = scalar_lea.vmem [#allocation12], %s450
        // Predicated region
        $region53: #{tpu_custom_call.1} parent=31 // pred_check
          %p452 = pneg %p146
        $region54: #{tpu_custom_call.1} parent=31 // pred_check_branch
          %454 = sbr.rel (%p452) target = $region56
        $region55: #{tpu_custom_call.1} parent=31 // pred_region
          %s456 = ssub.s32 128, 128
          %457 = vsyncadd %s448, %s456
          %s458 = sadd.s32 %s29, %s28
          %s459 = smul.addr %s458, 128
          %s460 = scalar_lea.hbm %s3, %s459
          %s462 = sshll.u32 %s451, 4
          %s463 = int_to_ptr.vmem [resolvable:$true] %s462
          %465 = dma.vmem_to_hbm [thread:$0]  %s463, 128, %s460, %s448
        $region56: #{tpu_custom_call.1} parent=31 // pred_fallthru
          _
      $region32: #{tpu_custom_call.1} parent=5 // pred_fallthru
        _
      %p466 = scmp.le.s32.totalorder 2, %s18
      // Predicated region
      $region57: #{tpu_custom_call.1} parent=5 // pred_check
        %p467 = pneg %p466
      $region58: #{tpu_custom_call.1} parent=5 // pred_check_branch
        %469 = sbr.rel (%p467) target = $region60
      $region59: #{tpu_custom_call.1} parent=5 // pred_region
        %s470 = ssub.s32 %s18, 2
        // Predicated region
        $region61: #{tpu_custom_call.1} parent=59 // pred_check
          %p471 = pneg %p152
        $region62: #{tpu_custom_call.1} parent=59 // pred_check_branch
          %473 = sbr.rel (%p471) target = $region64
        $region63: #{tpu_custom_call.1} parent=59 // pred_region
          %s474 = sand.u32 %s137, 1
          %s475 = scalar_lea.sflag [#allocation8], %s474
          %s476 = sand.u32 %s137, 1
          %s477 = smul.addr %s476, 8
          %s478 = scalar_lea.vmem [#allocation12], %s477
          %479 = dma.done %s475, 128
        $region64: #{tpu_custom_call.1} parent=59 // pred_fallthru
          _
      $region60: #{tpu_custom_call.1} parent=5 // pred_fallthru
        _
    $region6: #{tpu_custom_call.1} parent=1 // loop_footer
      %s22 = sadd.s32 1, %s18
    $region7: #{tpu_custom_call.1} parent=1 // loop_footer_branch
      %17 = sbr.rel target = $region3
    $region8: #{tpu_custom_call.1} parent=1 // loop_exit
      _
    %480 = vsyncpa [#allocation7], 1
    %s481 = scalar_lea.sflag [#allocation7], 1
    %482 = vsyncpa %s481, 1
    %483 = vsyncpa [#allocation10], 1
    %s484 = scalar_lea.sflag [#allocation10], 1
    %485 = vsyncpa %s484, 1
    %486 = vsyncpa [#allocation8], 1
    %s487 = scalar_lea.sflag [#allocation8], 1
    %488 = vsyncpa %s487, 1

</llo_original>
